<compile_context>
chip_gen: v5e
topology: v5e:2x2
jax: 0.10.0
libtpu: 0.0.40
codegen_flags: <defaults>
</compile_context>

<pallas_src>
import functools

import jax
import jax.numpy as jnp
from jax.experimental import pallas as pl
from jax.experimental.pallas import tpu as pltpu


def _round_up(a, b):
    return (a + b - 1) // b * b


def _cdiv(a, b):
    return (a + b - 1) // b


def fcnet_kernel(b2_ref, x_ref, w1_ref, b1_ref, w2_ref, o_ref, *, chunk):
    # x_ref : (TM, D) f32  -- batch tile, natural layout straight from HBM
    # w1_ref: (H, D)  f32  -- fc1 weight (pre-transposed), resident
    # b1_ref: (H, 1)  f32  -- fc1 bias, resident
    # w2_ref: (H, 1)  f32  -- fc2 weight, resident
    # b2_ref: (1,)    f32  -- fc2 bias, SMEM scalar
    # o_ref : (1, TM) f32  -- lane-dense output row (batch along lanes)
    w1 = w1_ref[...]          # hoisted: loaded/broadcast once, reused per chunk
    b1 = b1_ref[...]
    w2 = w2_ref[...]
    b2 = b2_ref[0]

    tm = x_ref.shape[0]
    n_chunks = tm // chunk

    # Static (trace-time) loop over lane-width chunks: bounds the live range of
    # the (H, chunk) f32 intermediate so a large TM never spills vregs, while
    # the HBM DMA for the whole (TM, D) tile stays one big contiguous block.
    for c in range(n_chunks):
        off = c * chunk                                      # static offset
        xs = x_ref[pl.ds(off, chunk), :]                     # (chunk, D)
        # fc1 on the MXU in the transposed domain:
        #   (H, D) @ (chunk, D)^T -> (H, chunk), f32 accumulation.
        h = jax.lax.dot_general(
            w1, xs, (((1,), (1,)), ((), ())),
            preferred_element_type=jnp.float32)
        h = jnp.maximum(h + b1, 0.0)                         # bias + ReLU (VPU)
        # fc2 (hidden -> 1): multiply (VPU) + sublane reduce (XLU)
        # -> lane-dense (1, chunk) row, stored unmasked along lanes.
        row = jnp.sum(h * w2, axis=0, keepdims=True) + b2
        o_ref[:, pl.ds(off, chunk)] = row.astype(o_ref.dtype)


@functools.partial(jax.jit, static_argnames=("target_tile_bytes", "chunk"))
def fc_net_forward(x, w1, b1, w2, b2, *, target_tile_bytes=1 << 20, chunk=512):
    """x: (B, D); w1: (D, H); b1: (H,); w2: (H, 1); b2: (1,). Returns (B, 1) f32."""
    B, D = x.shape
    H = w1.shape[1]
    lane = 128

    # D-aware batch tile: ~target_tile_bytes of x per grid step (>= 1024 rows,
    # multiple of 128), capped so the double-buffered x tile stays <= ~16 MiB.
    tm_target = max(1024, _cdiv(target_tile_bytes, 4 * D))
    tm_cap = max(lane, (8 << 20) // (4 * D) // lane * lane)
    TM = min(_round_up(tm_target, lane), _round_up(B, lane), tm_cap)
    if TM > chunk:
        TM = _round_up(TM, chunk)        # keep TM a whole number of chunks
    lane_chunk = min(chunk, TM)

    Bp = _round_up(B, TM)
    n_tiles = Bp // TM

    # Natural (B, D) f32 layout: no wrapper transpose / cast pass. Pad the
    # batch only when B is not a multiple of the tile. Padded rows compute
    # relu(b1)*w2 + b2 garbage that is sliced off below (any future reduction
    # over the batch axis must mask them).
    xp = x.astype(jnp.float32)
    if Bp != B:
        xp = jnp.pad(xp, ((0, Bp - B), (0, 0)))

    w1T = w1.T.astype(jnp.float32)                  # (H, D)  resident
    b1c = b1.reshape(H, 1).astype(jnp.float32)      # (H, 1)  resident
    w2c = w2.reshape(H, 1).astype(jnp.float32)      # (H, 1)  resident
    b2s = b2.reshape(1).astype(jnp.float32)         # (1,)    SMEM scalar

    kernel = functools.partial(fcnet_kernel, chunk=lane_chunk)

    out = pl.pallas_call(
        kernel,
        out_shape=jax.ShapeDtypeStruct((1, Bp), jnp.float32),
        grid_spec=pltpu.PrefetchScalarGridSpec(
            num_scalar_prefetch=0,
            grid=(n_tiles,),
            in_specs=[
                pl.BlockSpec(memory_space=pltpu.SMEM),         # b2 scalar
                pl.BlockSpec((TM, D), lambda i: (i, 0)),       # x batch tile
                pl.BlockSpec((H, D), lambda i: (0, 0)),        # w1^T (resident)
                pl.BlockSpec((H, 1), lambda i: (0, 0)),        # b1 (resident)
                pl.BlockSpec((H, 1), lambda i: (0, 0)),        # w2 (resident)
            ],
            out_specs=pl.BlockSpec((1, TM), lambda i: (0, i)),  # lane-dense row
        ),
        compiler_params=pltpu.CompilerParams(
            dimension_semantics=("parallel",),
            vmem_limit_bytes=32 * 1024 * 1024,   # explicit; safe on v5e/v6e/v7x
        ),
    )(b2s, xp, w1T, b1c, w2c)

    return out[0, :B].reshape(B, 1)


def init_params(key, input_dim, hidden_size):
    """Deterministic init mimicking nn.Linear's uniform(-1/sqrt(fan_in), 1/sqrt(fan_in))."""
    k1, k2, k3, k4 = jax.random.split(key, 4)
    bound1 = 1.0 / jnp.sqrt(jnp.float32(input_dim))
    bound2 = 1.0 / jnp.sqrt(jnp.float32(hidden_size))
    # Stored as (in, out) — transpose of PyTorch's (out, in) layout.
    w1 = jax.random.uniform(k1, (input_dim, hidden_size), jnp.float32, -bound1, bound1)
    b1 = jax.random.uniform(k2, (hidden_size,), jnp.float32, -bound1, bound1)
    w2 = jax.random.uniform(k3, (hidden_size, 1), jnp.float32, -bound2, bound2)
    b2 = jax.random.uniform(k4, (1,), jnp.float32, -bound2, bound2)
    return w1, b1, w2, b2


def ref_forward(x, w1, b1, w2, b2):
    # Same math as PyTorch FC_Net.forward, f32 end-to-end.
    h = jnp.maximum(
        jnp.dot(x, w1, precision=jax.lax.Precision.HIGHEST) + b1, 0.0)
    return jnp.dot(h, w2, precision=jax.lax.Precision.HIGHEST) + b2


if __name__ == "__main__":
    input_dim, hidden_size = 32, 32
    key = jax.random.PRNGKey(0)
    kx1, kx2, kp = jax.random.split(key, 3)
    w1, b1, w2, b2 = init_params(kp, input_dim, hidden_size)

    # Small batch: single grid step, chunk == tile.
    x1 = jax.random.normal(kx1, (8, input_dim), jnp.float32)
    out1 = jax.block_until_ready(fc_net_forward(x1, w1, b1, w2, b2))
    ref1 = ref_forward(x1, w1, b1, w2, b2)
    assert out1.shape == (8, 1)
    assert jnp.allclose(out1, ref1, atol=2e-3, rtol=2e-3), \
        float(jnp.max(jnp.abs(out1 - ref1)))

    # Non-multiple batch with a reduced tile target: exercises the multi-step
    # grid, the in-kernel chunk loop, and tail padding.
    x2 = jax.random.normal(kx2, (2500, input_dim), jnp.float32)
    out2 = jax.block_until_ready(
        fc_net_forward(x2, w1, b1, w2, b2, target_tile_bytes=1 << 17))
    ref2 = ref_forward(x2, w1, b1, w2, b2)
    assert out2.shape == (2500, 1)
    assert jnp.allclose(out2, ref2, atol=2e-3, rtol=2e-3), \
        float(jnp.max(jnp.abs(out2 - ref2)))

    print("KERNEL_OK")
</pallas_src>

<mosaic_0001>
module attributes {stable_mosaic.version = 11 : i64} {
  func.func @fcnet_kernel(%arg0: i32, %arg1: memref<1xf32, #tpu.memory_space<smem>>, %arg2: memref<128x32xf32, #tpu.memory_space<vmem>>, %arg3: memref<32x32xf32, #tpu.memory_space<vmem>>, %arg4: memref<32x1xf32, #tpu.memory_space<vmem>>, %arg5: memref<32x1xf32, #tpu.memory_space<vmem>>, %arg6: memref<1x128xf32, #tpu.memory_space<vmem>>) attributes {dimension_semantics = [#tpu.dimension_semantics<parallel>], iteration_bounds = array<i64: 1>, scalar_prefetch = 0 : i64, scratch_operands = 0 : i64, tpu.core_type = #tpu.core_type<tc>, window_params = [{transform_indices = @transform_0, window_bounds = array<i64: 1>}, {transform_indices = @transform_1, window_bounds = array<i64: 128, 32>}, {pipeline_mode = #tpu.pipeline_mode<synchronous>, transform_indices = @transform_2, window_bounds = array<i64: 32, 32>}, {pipeline_mode = #tpu.pipeline_mode<synchronous>, transform_indices = @transform_3, window_bounds = array<i64: 32, 1>}, {pipeline_mode = #tpu.pipeline_mode<synchronous>, transform_indices = @transform_4, window_bounds = array<i64: 32, 1>}, {transform_indices = @transform_5, window_bounds = array<i64: 1, 128>}]} {
    %c0 = arith.constant 0 : index
    %c0_0 = arith.constant 0 : index
    %0 = vector.load %arg3[%c0, %c0_0] : memref<32x32xf32, #tpu.memory_space<vmem>>, vector<32x32xf32>
    %c0_1 = arith.constant 0 : index
    %c0_2 = arith.constant 0 : index
    %1 = vector.load %arg4[%c0_1, %c0_2] : memref<32x1xf32, #tpu.memory_space<vmem>>, vector<32x1xf32>
    %c0_3 = arith.constant 0 : index
    %c0_4 = arith.constant 0 : index
    %2 = vector.load %arg5[%c0_3, %c0_4] : memref<32x1xf32, #tpu.memory_space<vmem>>, vector<32x1xf32>
    %c0_5 = arith.constant 0 : index
    %3 = memref.load %arg1[%c0_5] : memref<1xf32, #tpu.memory_space<smem>>
    %c0_6 = arith.constant 0 : index
    %c0_7 = arith.constant 0 : index
    %4 = vector.load %arg2[%c0_6, %c0_7] : memref<128x32xf32, #tpu.memory_space<vmem>>, vector<128x32xf32>
    %cst = arith.constant dense<0.000000e+00> : vector<32x128xf32>
    %5 = tpu.matmul %0, %4, %cst {dimension_numbers = #tpu.dot_dimension_numbers<[1], [1], [0], [0], [0, 0, 1, 0], [], []>} : vector<32x32xf32>, vector<128x32xf32>, vector<32x128xf32> -> vector<32x128xf32>
    %6 = vector.broadcast %1 : vector<32x1xf32> to vector<32x128xf32>
    %7 = arith.addf %5, %6 : vector<32x128xf32>
    %cst_8 = arith.constant 0.000000e+00 : f32
    %8 = vector.broadcast %cst_8 : f32 to vector<32x128xf32>
    %9 = arith.maximumf %7, %8 : vector<32x128xf32>
    %10 = vector.broadcast %2 : vector<32x1xf32> to vector<32x128xf32>
    %11 = arith.mulf %9, %10 : vector<32x128xf32>
    %cst_9 = arith.constant dense<0.000000e+00> : vector<128xf32>
    %12 = vector.multi_reduction <add>, %11, %cst_9 [0] : vector<32x128xf32> to vector<128xf32>
    %13 = vector.shape_cast %12 : vector<128xf32> to vector<1x128xf32>
    %14 = vector.broadcast %3 : f32 to vector<1x128xf32>
    %15 = arith.addf %13, %14 : vector<1x128xf32>
    %c0_10 = arith.constant 0 : index
    %c0_11 = arith.constant 0 : index
    %16 = vector.load %arg6[%c0_10, %c0_11] : memref<1x128xf32, #tpu.memory_space<vmem>>, vector<1x128xf32>
    tpu.vector_store %arg6[%c0_10, %c0_11], %15 {strides = array<i32>} : memref<1x128xf32, #tpu.memory_space<vmem>>, vector<1x128xf32>,
    return
  }
  func.func @transform_0(%arg0: i32) -> i32 {
    %c0_i32 = arith.constant 0 : i32
    %c0_i32_0 = arith.constant 0 : i32
    return %c0_i32 : i32
  }
  func.func @transform_1(%arg0: i32) -> (i32, i32) {
    %c0_i32 = arith.constant 0 : i32
    %c0_i32_0 = arith.constant 0 : i32
    return %arg0, %c0_i32 : i32, i32
  }
  func.func @transform_2(%arg0: i32) -> (i32, i32) {
    %c0_i32 = arith.constant 0 : i32
    %c0_i32_0 = arith.constant 0 : i32
    %c0_i32_1 = arith.constant 0 : i32
    return %c0_i32, %c0_i32_0 : i32, i32
  }
  func.func @transform_3(%arg0: i32) -> (i32, i32) {
    %c0_i32 = arith.constant 0 : i32
    %c0_i32_0 = arith.constant 0 : i32
    %c0_i32_1 = arith.constant 0 : i32
    return %c0_i32, %c0_i32_0 : i32, i32
  }
  func.func @transform_4(%arg0: i32) -> (i32, i32) {
    %c0_i32 = arith.constant 0 : i32
    %c0_i32_0 = arith.constant 0 : i32
    %c0_i32_1 = arith.constant 0 : i32
    return %c0_i32, %c0_i32_0 : i32, i32
  }
  func.func @transform_5(%arg0: i32) -> (i32, i32) {
    %c0_i32 = arith.constant 0 : i32
    %c0_i32_0 = arith.constant 0 : i32
    return %c0_i32, %arg0 : i32, i32
  }
}

</mosaic_0001>

<llo_original>
// kernel: fc_net_forward.1
$region0: #{fc_net_forward.1}
  #allocation0 [shape = 'u32[]', space=smem, size = 0x4, offset = 0x4, fixed_abs, tag = 'smem constant byte address 0x4 - core index']
  #allocation1 [shape = 'u32[72,128]{1,0:T(1,128)}', space=vmem, size = 0x9000, scoped, tag = 'internal scratch']
  #allocation2 [shape = 'f32[1]{0:T(128)S(6)}', space=smem, size = 0x200, scoped, tag = 'scoped memory for fc_net_forward.1']
  %s0 = inlined_call_operand.<no memory space> [shape: f32[1], index: 0, kind: input, shape index: {}]
  %s1 = inlined_call_operand.vmem [shape: f32[128,32], index: 1, kind: input, shape index: {}]
  %s2 = inlined_call_operand.vmem [shape: f32[32,32], index: 2, kind: input, shape index: {}]
  %s3 = inlined_call_operand.vmem [shape: f32[32,1], index: 3, kind: input, shape index: {}]
  %s4 = inlined_call_operand.vmem [shape: f32[32,1], index: 4, kind: input, shape index: {}]
  %s5 = inlined_call_operand.vmem [shape: f32[1,128], index: 5, kind: output, shape index: {}]
  %s6 = sld [smem:[#allocation0]]
  $region30: #{fc_net_forward.1} parent=0
    _
  %s8 = ssub.s32 1, %s6
  %s9 = scalar_select 0, %s8, %s6
  %10 = sst [smem:[#allocation2]] %s0
  // Predicated region
  $region2: #{fc_net_forward.1} parent=0 // pred_check
    _
  $region3: #{fc_net_forward.1} parent=0 // pred_check_branch
    %12 = sbr.rel (0) target = $region5
  $region4: #{fc_net_forward.1} parent=0 // pred_region
    _
  $region5: #{fc_net_forward.1} parent=0 // pred_fallthru
    _
  // Predicated region
  $region6: #{fc_net_forward.1} parent=0 // pred_check
    _
  $region7: #{fc_net_forward.1} parent=0 // pred_check_branch
    %14 = sbr.rel (0) target = $region9
  $region8: #{fc_net_forward.1} parent=0 // pred_region
    _
  $region9: #{fc_net_forward.1} parent=0 // pred_fallthru
    _
  // Predicated region
  $region10: #{fc_net_forward.1} parent=0 // pred_check
    _
  $region11: #{fc_net_forward.1} parent=0 // pred_check_branch
    %16 = sbr.rel (0) target = $region13
  $region12: #{fc_net_forward.1} parent=0 // pred_region
    _
  $region13: #{fc_net_forward.1} parent=0 // pred_fallthru
    _
  // Predicated region
  $region14: #{fc_net_forward.1} parent=0 // pred_check
    _
  $region15: #{fc_net_forward.1} parent=0 // pred_check_branch
    %18 = sbr.rel (0) target = $region17
  $region16: #{fc_net_forward.1} parent=0 // pred_region
    _
  $region17: #{fc_net_forward.1} parent=0 // pred_fallthru
    _
  // Predicated region
  $region18: #{fc_net_forward.1} parent=0 // pred_check
    _
  $region19: #{fc_net_forward.1} parent=0 // pred_check_branch
    %20 = sbr.rel (0) target = $region21
  $region20: #{fc_net_forward.1} parent=0 // pred_region
    _
  $region21: #{fc_net_forward.1} parent=0 // pred_fallthru
    _
  %v21 = vld [vmem:[%s2] sm:$0xff]
  %v22 = vld [vmem:[%s2 + $0x8] sm:$0xff]
  %v23 = vld [vmem:[%s2 + $0x10] sm:$0xff]
  %v24 = vld [vmem:[%s2 + $0x18] sm:$0xff]
  %v25 = vld [vmem:[%s3] sm:$0xff]
  %v26 = vld [vmem:[%s3 + $0x8] sm:$0xff]
  %v27 = vld [vmem:[%s3 + $0x10] sm:$0xff]
  %v28 = vld [vmem:[%s3 + $0x18] sm:$0xff]
  %v29 = vld [vmem:[%s4] sm:$0xff]
  %v30 = vld [vmem:[%s4 + $0x8] sm:$0xff]
  %v31 = vld [vmem:[%s4 + $0x10] sm:$0xff]
  %v32 = vld [vmem:[%s4 + $0x18] sm:$0xff]
  %s33 = sld [smem:[#allocation2]]
  %v34 = vld [vmem:[%s1] sm:$0xff]
  %v35 = vld [vmem:[%s1 + $0x8] sm:$0xff]
  %v36 = vld [vmem:[%s1 + $0x10] sm:$0xff]
  %v37 = vld [vmem:[%s1 + $0x18] sm:$0xff]
  %v38 = vld [vmem:[%s1 + $0x20] sm:$0xff]
  %v39 = vld [vmem:[%s1 + $0x28] sm:$0xff]
  %v40 = vld [vmem:[%s1 + $0x30] sm:$0xff]
  %v41 = vld [vmem:[%s1 + $0x38] sm:$0xff]
  %v42 = vld [vmem:[%s1 + $0x40] sm:$0xff]
  %v43 = vld [vmem:[%s1 + $0x48] sm:$0xff]
  %v44 = vld [vmem:[%s1 + $0x50] sm:$0xff]
  %v45 = vld [vmem:[%s1 + $0x58] sm:$0xff]
  %v46 = vld [vmem:[%s1 + $0x60] sm:$0xff]
  %v47 = vld [vmem:[%s1 + $0x68] sm:$0xff]
  %v48 = vld [vmem:[%s1 + $0x70] sm:$0xff]
  %v49 = vld [vmem:[%s1 + $0x78] sm:$0xff]
  %51 = vset.pattern.permute.xlu0 0
  %52 = vperm.xlu0 %51, %v25
  %v53 = vpop.permute.xlu0 %52
  %56 = vset.pattern.permute.xlu0 0
  %57 = vperm.xlu0 %56, %v26
  %v58 = vpop.permute.xlu0 %57
  %61 = vset.pattern.permute.xlu0 0
  %62 = vperm.xlu0 %61, %v27
  %v63 = vpop.permute.xlu0 %62
  %66 = vset.pattern.permute.xlu0 0
  %67 = vperm.xlu0 %66, %v28
  %v68 = vpop.permute.xlu0 %67
  %vm70 = vcmask 261120
  %v72 = vsel %vm70, %v21, 0
  %v75 = vsel %vm70, %v22, 0
  %v78 = vsel %vm70, %v23, 0
  %v81 = vsel %vm70, %v24, 0
  %v84 = vsel %vm70, %v34, 0
  %v87 = vsel %vm70, %v35, 0
  %v90 = vsel %vm70, %v36, 0
  %v93 = vsel %vm70, %v37, 0
  %v96 = vsel %vm70, %v38, 0
  %v99 = vsel %vm70, %v39, 0
  %v102 = vsel %vm70, %v40, 0
  %v105 = vsel %vm70, %v41, 0
  %v108 = vsel %vm70, %v42, 0
  %v111 = vsel %vm70, %v43, 0
  %v114 = vsel %vm70, %v44, 0
  %v117 = vsel %vm70, %v45, 0
  %v120 = vsel %vm70, %v46, 0
  %v123 = vsel %vm70, %v47, 0
  %v126 = vsel %vm70, %v48, 0
  %v129 = vsel %vm70, %v49, 0
  %131 = vmatpush.xpose.msra.mxu0 %v129
  %132 = vmatpush.xpose.msra.mxu0 %v126
  %133 = vmatpush.xpose.msra.mxu0 %v123
  %134 = vmatpush.xpose.msra.mxu0 %v120
  %135 = vmatpush.xpose.msra.mxu0 %v117
  %136 = vmatpush.xpose.msra.mxu0 %v114
  %137 = vmatpush.xpose.msra.mxu0 %v111
  %138 = vmatpush.xpose.msra.mxu0 %v108
  %139 = vmatpush.xpose.msra.mxu0 %v105
  %140 = vmatpush.xpose.msra.mxu0 %v102
  %141 = vmatpush.xpose.msra.mxu0 %v99
  %142 = vmatpush.xpose.msra.mxu0 %v96
  %143 = vmatpush.xpose.msra.mxu0 %v93
  %144 = vmatpush.xpose.msra.mxu0 %v90
  %145 = vmatpush.xpose.msra.mxu0 %v87
  %146 = vmatpush.xpose.msra.mxu0 %v84
  %147 = vmatmul.f32.gmra.mxu0 %v72
  %v148 = vpop.f32.mrf.mxu0
  %v149 = vadd.f32 %v53, %v148
  %150 = vmatmul.f32.gmra.mxu0 %v75
  %v151 = vpop.f32.mrf.mxu0
  %v152 = vadd.f32 %v58, %v151
  %153 = vmatmul.f32.gmra.mxu0 %v78
  %v154 = vpop.f32.mrf.mxu0
  %v155 = vadd.f32 %v63, %v154
  %156 = vmatmul.f32.gmra.mxu0 %v81
  %v157 = vpop.f32.mrf.mxu0
  %v158 = vadd.f32 %v68, %v157
  %159 = vdwg.mxu0
  %v160 = vmax.f32 %v149, 0.0
  %v161 = vmax.f32 %v152, 0.0
  %v162 = vmax.f32 %v155, 0.0
  %v163 = vmax.f32 %v158, 0.0
  %165 = vset.pattern.permute.xlu0 0
  %166 = vperm.xlu0 %165, %v29
  %v167 = vpop.permute.xlu0 %166
  %170 = vset.pattern.permute.xlu0 0
  %171 = vperm.xlu0 %170, %v30
  %v172 = vpop.permute.xlu0 %171
  %175 = vset.pattern.permute.xlu0 0
  %176 = vperm.xlu0 %175, %v31
  %v177 = vpop.permute.xlu0 %176
  %180 = vset.pattern.permute.xlu0 0
  %181 = vperm.xlu0 %180, %v32
  %v182 = vpop.permute.xlu0 %181
  %v184 = vmul.f32 %v160, %v167
  %v185 = vmul.f32 %v161, %v172
  %v186 = vmul.f32 %v162, %v177
  %v187 = vmul.f32 %v163, %v182
  %v188 = vadd.f32 %v184, %v185
  %v189 = vadd.f32 %v188, %v186
  %v190 = vadd.f32 %v189, %v187
  %v191 = vrot.slane %v190, 4
  %v192 = vadd.f32 %v190, %v191
  %v193 = vrot.slane %v192, 2
  %v194 = vadd.f32 %v192, %v193
  %v195 = vrot.slane %v194, 1
  %v196 = vadd.f32 %v194, %v195
  %v197 = vstv %s33
  %v198 = vadd.f32 %v196, %v197
  %199 = vst [vmem:[%s5] sm:$0x1] %v198
  // Predicated region
  $region22: #{fc_net_forward.1} parent=0 // pred_check
    _
  $region23: #{fc_net_forward.1} parent=0 // pred_check_branch
    %201 = sbr.rel (0) target = $region25
  $region24: #{fc_net_forward.1} parent=0 // pred_region
    _
  $region25: #{fc_net_forward.1} parent=0 // pred_fallthru
    _
  // Predicated region
  $region26: #{fc_net_forward.1} parent=0 // pred_check
    _
  $region27: #{fc_net_forward.1} parent=0 // pred_check_branch
    %203 = sbr.rel (0) target = $region29
  $region28: #{fc_net_forward.1} parent=0 // pred_region
    _
  $region29: #{fc_net_forward.1} parent=0 // pred_fallthru
    _

</llo_original>
